<compile_context>
chip_gen: v7x
topology: tpu7x:2x2x1
jax: 0.10.0
libtpu: 0.0.40
codegen_flags: <defaults>
</compile_context>

<pallas_src>
import jax
import jax.numpy as jnp
from jax.experimental import pallas as pl
from jax.experimental.pallas import tpu as pltpu


def _round_up(x, m):
    return (x + m - 1) // m * m


def _select_tiles(n, tm, tk, itemsize, a_budget_bytes=24 << 20):
    """Pick (tm, tk, nm, nk) given N and the compute dtype size."""
    # Cap the A double buffer (power-of-two halving keeps 128/8 multiples).
    while 2 * tm * tk * itemsize > a_budget_bytes and tk > 512:
        tk //= 2
    while 2 * tm * tk * itemsize > a_budget_bytes and tm > 64:
        tm //= 2
    # Keep >= ~4 row tiles when N allows so the "parallel" row axis actually
    # shards across v7x's two TensorCores (losing megacore is a straight 2x).
    if 32 <= n < 4 * tm:
        tm = max(8, _round_up(-(-n // 4), 8))
    tm = min(tm, _round_up(n, 8))          # row tile (independent axis), 8-multiple
    tk = min(tk, _round_up(n, 128))        # contraction tile (last grid axis), 128-multiple
    nm = _round_up(n, tm)                  # padded rows
    nk = _round_up(n, tk)                  # padded contraction dim
    return tm, tk, nm, nk


def prepare_adjacency(A, num_nodes=None, *, tm=512, tk=4096,
                      compute_dtype=jnp.bfloat16):
    """Pad + cast the adjacency once (cache this across GCN layers / time steps).

    Passing the result to basic_graph_convolution (with the same tm/tk/compute_dtype)
    skips the per-call N^2 pad/cast round trip through HBM.
    """
    n = A.shape[0] if num_nodes is None else num_nodes
    cdt = jnp.dtype(compute_dtype)
    _, _, nm, nk = _select_tiles(n, tm, tk, cdt.itemsize)
    if A.shape == (nm, nk) and A.dtype == cdt:
        return A
    return jnp.zeros((nm, nk), cdt).at[:n, :n].set(A[:n, :n].astype(cdt))


def gcn_kernel(a_ref, x_ref, w2_ref, w1_ref, b_ref, o_ref, y_acc):
    """Grid = (row_tiles, k_tiles); k (adjacency contraction) is the last axis.

    Per row tile i:
        Y_i   = sum_k A[i, k] @ X[k]                 (f32 accumulator scratch)
        out_i = Y_i @ W2 + X[i] @ W1 + bias          (lane-dense 128-padded out dim)
    """
    i = pl.program_id(0)
    k = pl.program_id(1)
    tm, tk = a_ref.shape                   # static block shape

    @pl.when(k == 0)
    def _():
        y_acc[...] = jnp.zeros_like(y_acc)

    # Stream the A (tm, tk) tile against the matching rows of the resident X.
    xk = x_ref[pl.ds(pl.multiple_of(k * tk, tk), tk), :]
    y_acc[...] += jnp.dot(a_ref[...], xk, preferred_element_type=jnp.float32)

    @pl.when(k == pl.num_programs(1) - 1)
    def _():
        xi = x_ref[pl.ds(pl.multiple_of(i * tm, tm), tm), :]
        # Keep Y in f32 for the final dot (no precision loss from the accumulator).
        out = (jnp.dot(y_acc[...], w2_ref[...].astype(jnp.float32),
                       preferred_element_type=jnp.float32)
               + jnp.dot(xi, w1_ref[...], preferred_element_type=jnp.float32)
               + b_ref[...])
        o_ref[...] = out.astype(o_ref.dtype)


def basic_graph_convolution(X, A, W1, W2, bias, *, tm=512, tk=4096,
                            compute_dtype=jnp.bfloat16, a_buffers=2):
    """Pallas implementation of BasicGraphConvolutionLayer.forward(X, A).

    X: [n, in_ch] node features; A: [n, n] dense adjacency (or a pre-padded
    adjacency from prepare_adjacency); W1/W2: [in_ch, out_ch]; bias: [out_ch].
    compute_dtype: operand dtype of the A/X stream (bf16 default; accumulation and
    the returned result are always float32).
    """
    n, c = X.shape
    out_ch = W1.shape[1]
    cdt = jnp.dtype(compute_dtype)
    isz = cdt.itemsize

    lane = 128
    out_p = _round_up(out_ch, lane)                      # lane-dense output width
    tm, tk, nm, nk = _select_tiles(n, tm, tk, isz)
    np_x = max(nm, nk)                                   # resident-X padded rows

    # --- Adjacency: avoid the per-call N^2 pad/cast when possible. ---
    if A.shape == (nm, nk) and A.dtype == cdt:
        a_p = A                                          # pre-padded / already aligned
    else:
        a_p = jnp.zeros((nm, nk), cdt).at[:n, :n].set(A[:n, :n].astype(cdt))

    # X / weights / bias are tiny compared to A; pad + cast per call.
    if X.shape == (np_x, c) and X.dtype == cdt:
        x_p = X
    else:
        x_p = jnp.zeros((np_x, c), cdt).at[:n, :].set(X.astype(cdt))
    w2_p = jnp.zeros((c, out_p), cdt).at[:, :out_ch].set(W2.astype(cdt))
    w1_p = jnp.zeros((c, out_p), cdt).at[:, :out_ch].set(W1.astype(cdt))
    b_p = jnp.zeros((1, out_p), jnp.float32).at[0, :out_ch].set(
        bias.astype(jnp.float32))

    # --- VMEM budget: A double buffer + resident X + weights + output + scratch. ---
    vmem_need = (2 * tm * tk * isz                       # A (double-buffered)
                 + 2 * np_x * c * isz                    # resident X (conservative x2)
                 + 2 * 2 * c * out_p * isz               # W2, W1
                 + 2 * out_p * 4                         # bias
                 + 2 * tm * out_p * 4                    # output (double-buffered)
                 + tm * c * 4)                           # f32 accumulator scratch
    vmem_limit = min(max(int(1.5 * vmem_need) + (4 << 20), 32 << 20), 64 << 20)

    cost = pl.CostEstimate(
        flops=2 * n * n * c + 4 * n * c * out_ch,
        transcendentals=0,
        bytes_accessed=isz * (nm * nk + np_x * c + 2 * c * out_p)
        + 4 * (out_p + nm * out_p),
    )

    # A stream spec; deepen buffering if profiling shows exposed DMA.
    if a_buffers != 2:
        a_spec = pl.BlockSpec((tm, tk), lambda i, k: (i, k),
                              pipeline_mode=pl.Buffered(a_buffers))
    else:
        a_spec = pl.BlockSpec((tm, tk), lambda i, k: (i, k))

    out_full = pl.pallas_call(
        gcn_kernel,
        out_shape=jax.ShapeDtypeStruct((nm, out_p), jnp.float32),
        grid=(nm // tm, nk // tk),
        in_specs=[
            a_spec,                                            # A tile (streamed)
            pl.BlockSpec((np_x, c), lambda i, k: (0, 0)),      # X (fully resident)
            pl.BlockSpec((c, out_p), lambda i, k: (0, 0)),     # W2 (padded, resident)
            pl.BlockSpec((c, out_p), lambda i, k: (0, 0)),     # W1 (padded, resident)
            pl.BlockSpec((1, out_p), lambda i, k: (0, 0)),     # bias (padded)
        ],
        out_specs=pl.BlockSpec((tm, out_p), lambda i, k: (i, 0)),
        scratch_shapes=[pltpu.VMEM((tm, c), jnp.float32)],     # Y = A@X accumulator
        compiler_params=pltpu.CompilerParams(
            dimension_semantics=("parallel", "arbitrary"),
            vmem_limit_bytes=vmem_limit),
        cost_estimate=cost,
    )(a_p, x_p, w2_p, w1_p, b_p)

    return out_full[:n, :out_ch]


if __name__ == "__main__":
    # Module config (small demo shapes consistent with the PyTorch module).
    in_channels = 16
    out_channels = 32
    num_nodes = 8

    key = jax.random.PRNGKey(0)
    k_w2, k_w1, k_x, k_a = jax.random.split(key, 4)

    # Parameters (torch.rand -> uniform [0,1); bias -> zeros)
    W2 = jax.random.uniform(k_w2, (in_channels, out_channels), dtype=jnp.float32)
    W1 = jax.random.uniform(k_w1, (in_channels, out_channels), dtype=jnp.float32)
    bias = jnp.zeros((out_channels,), dtype=jnp.float32)

    # Example inputs
    X = jax.random.normal(k_x, (num_nodes, in_channels), dtype=jnp.float32)
    A = jax.random.uniform(k_a, (num_nodes, num_nodes), dtype=jnp.float32)

    # Pure-JAX reference (same math as the PyTorch forward)
    ref = A @ (X @ W2) + X @ W1 + bias

    # Exact f32 path
    out_f32 = jax.block_until_ready(
        basic_graph_convolution(X, A, W1, W2, bias, compute_dtype=jnp.float32))
    assert out_f32.shape == (num_nodes, out_channels)
    assert jnp.allclose(out_f32, ref, atol=1e-4, rtol=1e-4)

    # Default path: bf16 A/X stream, f32 accumulation — looser tolerance.
    out_bf16 = jax.block_until_ready(basic_graph_convolution(X, A, W1, W2, bias))
    assert out_bf16.shape == (num_nodes, out_channels)
    assert jnp.allclose(out_bf16, ref, atol=0.25, rtol=0.05)

    # Cached / pre-padded adjacency path (skips the per-call N^2 pad+cast of A).
    A_prepped = prepare_adjacency(A)
    out_cached = jax.block_until_ready(
        basic_graph_convolution(X, A_prepped, W1, W2, bias))
    assert jnp.allclose(out_cached, out_bf16, atol=1e-6, rtol=1e-6)

    print("KERNEL_OK")
</pallas_src>

<mosaic_0001>
module attributes {stable_mosaic.version = 11 : i64} {
  func.func @gcn_kernel(%arg0: i32, %arg1: i32, %arg2: memref<8x128xf32, #tpu.memory_space<vmem>>, %arg3: memref<128x16xf32, #tpu.memory_space<vmem>>, %arg4: memref<16x128xf32, #tpu.memory_space<vmem>>, %arg5: memref<16x128xf32, #tpu.memory_space<vmem>>, %arg6: memref<1x128xf32, #tpu.memory_space<vmem>>, %arg7: memref<8x128xf32, #tpu.memory_space<vmem>>, %arg8: memref<8x16xf32, #tpu.memory_space<vmem>>) attributes {dimension_semantics = [#tpu.dimension_semantics<parallel>, #tpu.dimension_semantics<arbitrary>], iteration_bounds = array<i64: 1, 1>, scalar_prefetch = 0 : i64, scratch_operands = 1 : i64, tpu.core_type = #tpu.core_type<tc>, window_params = [{transform_indices = @transform_0, window_bounds = array<i64: 8, 128>}, {pipeline_mode = #tpu.pipeline_mode<synchronous>, transform_indices = @transform_1, window_bounds = array<i64: 128, 16>}, {pipeline_mode = #tpu.pipeline_mode<synchronous>, transform_indices = @transform_2, window_bounds = array<i64: 16, 128>}, {pipeline_mode = #tpu.pipeline_mode<synchronous>, transform_indices = @transform_3, window_bounds = array<i64: 16, 128>}, {pipeline_mode = #tpu.pipeline_mode<synchronous>, transform_indices = @transform_4, window_bounds = array<i64: 1, 128>}, {transform_indices = @transform_5, window_bounds = array<i64: 8, 128>}]} {
    %c0_i32 = arith.constant 0 : i32
    %0 = arith.cmpi eq, %arg1, %c0_i32 : i32
    %1 = arith.extui %0 : i1 to i32
    %c0_i32_0 = arith.constant 0 : i32
    %2 = arith.cmpi ne, %1, %c0_i32_0 : i32
    scf.if %2 {
      %cst_9 = arith.constant 0.000000e+00 : f32
      %15 = vector.broadcast %cst_9 : f32 to vector<8x16xf32>
      %c0_10 = arith.constant 0 : index
      %c0_11 = arith.constant 0 : index
      %16 = vector.load %arg8[%c0_10, %c0_11] : memref<8x16xf32, #tpu.memory_space<vmem>>, vector<8x16xf32>
      tpu.vector_store %arg8[%c0_10, %c0_11], %15 {strides = array<i32>} : memref<8x16xf32, #tpu.memory_space<vmem>>, vector<8x16xf32>,
    } else {
    }
    %c128_i32 = arith.constant 128 : i32
    %3 = arith.muli %arg1, %c128_i32 : i32
    %4 = tpu.assume_multiple %3, 128 : i32
    %5 = arith.index_cast %4 : i32 to index
    %c0 = arith.constant 0 : index
    %6 = vector.load %arg3[%5, %c0] : memref<128x16xf32, #tpu.memory_space<vmem>>, vector<128x16xf32>
    %c0_1 = arith.constant 0 : index
    %c0_2 = arith.constant 0 : index
    %7 = vector.load %arg8[%c0_1, %c0_2] : memref<8x16xf32, #tpu.memory_space<vmem>>, vector<8x16xf32>
    %c0_3 = arith.constant 0 : index
    %c0_4 = arith.constant 0 : index
    %8 = vector.load %arg2[%c0_3, %c0_4] : memref<8x128xf32, #tpu.memory_space<vmem>>, vector<8x128xf32>
    %cst = arith.constant dense<0.000000e+00> : vector<8x16xf32>
    %9 = tpu.matmul %8, %6, %cst {dimension_numbers = #tpu.dot_dimension_numbers<[1], [0], [0], [1], [0, 0, 1, 1], [], []>} : vector<8x128xf32>, vector<128x16xf32>, vector<8x16xf32> -> vector<8x16xf32>
    %10 = arith.addf %7, %9 : vector<8x16xf32>
    %c0_5 = arith.constant 0 : index
    %c0_6 = arith.constant 0 : index
    %11 = vector.load %arg8[%c0_5, %c0_6] : memref<8x16xf32, #tpu.memory_space<vmem>>, vector<8x16xf32>
    tpu.vector_store %arg8[%c0_5, %c0_6], %10 {strides = array<i32>} : memref<8x16xf32, #tpu.memory_space<vmem>>, vector<8x16xf32>,
    %c0_i32_7 = arith.constant 0 : i32
    %12 = arith.cmpi eq, %arg1, %c0_i32_7 : i32
    %13 = arith.extui %12 : i1 to i32
    %c0_i32_8 = arith.constant 0 : i32
    %14 = arith.cmpi ne, %13, %c0_i32_8 : i32
    scf.if %14 {
      %c8_i32 = arith.constant 8 : i32
      %15 = arith.muli %arg0, %c8_i32 : i32
      %16 = tpu.assume_multiple %15, 8 : i32
      %17 = arith.index_cast %16 : i32 to index
      %c0_9 = arith.constant 0 : index
      %18 = vector.load %arg3[%17, %c0_9] : memref<128x16xf32, #tpu.memory_space<vmem>>, vector<8x16xf32>
      %c0_10 = arith.constant 0 : index
      %c0_11 = arith.constant 0 : index
      %19 = vector.load %arg8[%c0_10, %c0_11] : memref<8x16xf32, #tpu.memory_space<vmem>>, vector<8x16xf32>
      %c0_12 = arith.constant 0 : index
      %c0_13 = arith.constant 0 : index
      %20 = vector.load %arg4[%c0_12, %c0_13] : memref<16x128xf32, #tpu.memory_space<vmem>>, vector<16x128xf32>
      %cst_14 = arith.constant dense<0.000000e+00> : vector<8x128xf32>
      %21 = tpu.matmul %19, %20, %cst_14 {dimension_numbers = #tpu.dot_dimension_numbers<[1], [0], [0], [1], [0, 0, 1, 1], [], []>} : vector<8x16xf32>, vector<16x128xf32>, vector<8x128xf32> -> vector<8x128xf32>
      %c0_15 = arith.constant 0 : index
      %c0_16 = arith.constant 0 : index
      %22 = vector.load %arg5[%c0_15, %c0_16] : memref<16x128xf32, #tpu.memory_space<vmem>>, vector<16x128xf32>
      %cst_17 = arith.constant dense<0.000000e+00> : vector<8x128xf32>
      %23 = tpu.matmul %18, %22, %cst_17 {dimension_numbers = #tpu.dot_dimension_numbers<[1], [0], [0], [1], [0, 0, 1, 1], [], []>} : vector<8x16xf32>, vector<16x128xf32>, vector<8x128xf32> -> vector<8x128xf32>
      %24 = arith.addf %21, %23 : vector<8x128xf32>
      %c0_18 = arith.constant 0 : index
      %c0_19 = arith.constant 0 : index
      %25 = vector.load %arg6[%c0_18, %c0_19] : memref<1x128xf32, #tpu.memory_space<vmem>>, vector<1x128xf32>
      %26 = vector.broadcast %25 : vector<1x128xf32> to vector<8x128xf32>
      %27 = arith.addf %24, %26 : vector<8x128xf32>
      %c0_20 = arith.constant 0 : index
      %c0_21 = arith.constant 0 : index
      %28 = vector.load %arg7[%c0_20, %c0_21] : memref<8x128xf32, #tpu.memory_space<vmem>>, vector<8x128xf32>
      tpu.vector_store %arg7[%c0_20, %c0_21], %27 {strides = array<i32>} : memref<8x128xf32, #tpu.memory_space<vmem>>, vector<8x128xf32>,
    } else {
    }
    return
  }
  func.func @transform_0(%arg0: i32, %arg1: i32) -> (i32, i32) {
    %c0_i32 = arith.constant 0 : i32
    return %arg0, %arg1 : i32, i32
  }
  func.func @transform_1(%arg0: i32, %arg1: i32) -> (i32, i32) {
    %c0_i32 = arith.constant 0 : i32
    %c0_i32_0 = arith.constant 0 : i32
    %c0_i32_1 = arith.constant 0 : i32
    return %c0_i32, %c0_i32_0 : i32, i32
  }
  func.func @transform_2(%arg0: i32, %arg1: i32) -> (i32, i32) {
    %c0_i32 = arith.constant 0 : i32
    %c0_i32_0 = arith.constant 0 : i32
    %c0_i32_1 = arith.constant 0 : i32
    return %c0_i32, %c0_i32_0 : i32, i32
  }
  func.func @transform_3(%arg0: i32, %arg1: i32) -> (i32, i32) {
    %c0_i32 = arith.constant 0 : i32
    %c0_i32_0 = arith.constant 0 : i32
    %c0_i32_1 = arith.constant 0 : i32
    return %c0_i32, %c0_i32_0 : i32, i32
  }
  func.func @transform_4(%arg0: i32, %arg1: i32) -> (i32, i32) {
    %c0_i32 = arith.constant 0 : i32
    %c0_i32_0 = arith.constant 0 : i32
    %c0_i32_1 = arith.constant 0 : i32
    return %c0_i32, %c0_i32_0 : i32, i32
  }
  func.func @transform_5(%arg0: i32, %arg1: i32) -> (i32, i32) {
    %c0_i32 = arith.constant 0 : i32
    %c0_i32_0 = arith.constant 0 : i32
    return %arg0, %c0_i32 : i32, i32
  }
}

</mosaic_0001>

<llo_original>
// kernel: tpu_custom_call.1
$region0: #{tpu_custom_call.1}
  #allocation0 [shape = 'u32[]', space=smem, size = 0x4, offset = 0x4, fixed_abs, tag = 'smem constant byte address 0x4 - core index']
  #allocation1 [shape = 'u32[144,128]{1,0:T(1,128)}', space=vmem, size = 0x12000, scoped, tag = 'internal scratch']
  #allocation2 [shape = 'f32[8,16]{1,0:T(8,128)}', space=vmem, size = 0x1000, scoped, tag = 'scratch operand']
  %s0 = inlined_call_operand.vmem [shape: f32[8,128], index: 0, kind: input, shape index: {}]
  %s1 = inlined_call_operand.vmem [shape: f32[128,16], index: 1, kind: input, shape index: {}]
  %s2 = inlined_call_operand.vmem [shape: f32[16,128], index: 2, kind: input, shape index: {}]
  %s3 = inlined_call_operand.vmem [shape: f32[16,128], index: 3, kind: input, shape index: {}]
  %s4 = inlined_call_operand.vmem [shape: f32[1,128], index: 4, kind: input, shape index: {}]
  %s5 = inlined_call_operand.hbm [shape: f32[8,128], index: 5, kind: output, shape index: {}]
  %s6 = sld [smem:[#allocation0]]
  $region38: #{tpu_custom_call.1} parent=0
    _
  %s8 = ssub.s32 1, %s6
  %s9 = scalar_select 0, %s8, %s6
  $region1: #{tpu_custom_call.1} parent=0
    #allocation3 [shape = 'u8[4096]{0}', space=vmem, size = 0x1000, scoped, tag = 'output window, operand 0, single buffered']
    #allocation4 [shape = 's32[1]{0}', space=sflag, size = 0x4, scoped, tag = 'scoped memory for tpu_custom_call.1']
    %10 = vsyncpa [#allocation4], 0
    // Predicated region
    $region2: #{tpu_custom_call.1} parent=1 // pred_check
      _
    $region3: #{tpu_custom_call.1} parent=1 // pred_check_branch
      %12 = sbr.rel (0) target = $region5
    $region4: #{tpu_custom_call.1} parent=1 // pred_region
      _
    $region5: #{tpu_custom_call.1} parent=1 // pred_fallthru
      _
    // Predicated region
    $region6: #{tpu_custom_call.1} parent=1 // pred_check
      _
    $region7: #{tpu_custom_call.1} parent=1 // pred_check_branch
      %14 = sbr.rel (0) target = $region9
    $region8: #{tpu_custom_call.1} parent=1 // pred_region
      _
    $region9: #{tpu_custom_call.1} parent=1 // pred_fallthru
      _
    // Predicated region
    $region10: #{tpu_custom_call.1} parent=1 // pred_check
      _
    $region11: #{tpu_custom_call.1} parent=1 // pred_check_branch
      %16 = sbr.rel (0) target = $region13
    $region12: #{tpu_custom_call.1} parent=1 // pred_region
      _
    $region13: #{tpu_custom_call.1} parent=1 // pred_fallthru
      _
    // Predicated region
    $region14: #{tpu_custom_call.1} parent=1 // pred_check
      _
    $region15: #{tpu_custom_call.1} parent=1 // pred_check_branch
      %18 = sbr.rel (0) target = $region17
    $region16: #{tpu_custom_call.1} parent=1 // pred_region
      _
    $region17: #{tpu_custom_call.1} parent=1 // pred_fallthru
      _
    // Predicated region
    $region18: #{tpu_custom_call.1} parent=1 // pred_check
      _
    $region19: #{tpu_custom_call.1} parent=1 // pred_check_branch
      %20 = sbr.rel (0) target = $region21
    $region20: #{tpu_custom_call.1} parent=1 // pred_region
      _
    $region21: #{tpu_custom_call.1} parent=1 // pred_fallthru
      _
    %p21 = scmp.eq.s32.totalorder 0, 0
    // Predicated region
    $region22: #{tpu_custom_call.1} parent=1 // pred_check
      %p22 = pneg %p21
    $region23: #{tpu_custom_call.1} parent=1 // pred_check_branch
      %24 = sbr.rel (%p22) target = $region25
    $region24: #{tpu_custom_call.1} parent=1 // pred_region
      %vm25 = vcmask 130048
      %26 = vst.msk [vmem:[#allocation2] sm:$0xff] %vm25, 0.0
    $region25: #{tpu_custom_call.1} parent=1 // pred_fallthru
      _
    %s27 = smul.u32 0, 128
    %s28 = scalar_lea.vmem %s1, %s27
    %v29 = vld [vmem:[%s28] sm:$0xff]
    %v30 = vld [vmem:[%s28 + $0x8] sm:$0xff]
    %v31 = vld [vmem:[%s28 + $0x10] sm:$0xff]
    %v32 = vld [vmem:[%s28 + $0x18] sm:$0xff]
    %v33 = vld [vmem:[%s28 + $0x20] sm:$0xff]
    %v34 = vld [vmem:[%s28 + $0x28] sm:$0xff]
    %v35 = vld [vmem:[%s28 + $0x30] sm:$0xff]
    %v36 = vld [vmem:[%s28 + $0x38] sm:$0xff]
    %v37 = vld [vmem:[%s28 + $0x40] sm:$0xff]
    %v38 = vld [vmem:[%s28 + $0x48] sm:$0xff]
    %v39 = vld [vmem:[%s28 + $0x50] sm:$0xff]
    %v40 = vld [vmem:[%s28 + $0x58] sm:$0xff]
    %v41 = vld [vmem:[%s28 + $0x60] sm:$0xff]
    %v42 = vld [vmem:[%s28 + $0x68] sm:$0xff]
    %v43 = vld [vmem:[%s28 + $0x70] sm:$0xff]
    %v44 = vld [vmem:[%s28 + $0x78] sm:$0xff]
    %v45 = vld [vmem:[#allocation2] sm:$0xff]
    %v46 = vld [vmem:[%s0] sm:$0xff]
    %47 = vmatprep.subr.mxu0 0.0
    %48 = vmatpush1.msra.mxu0 %v29
    %49 = vmatprep.subr.mxu0 0.0
    %50 = vmatpush1.msra.mxu0 %v30
    %51 = vmatprep.subr.mxu0 0.0
    %52 = vmatpush1.msra.mxu0 %v31
    %53 = vmatprep.subr.mxu0 0.0
    %54 = vmatpush1.msra.mxu0 %v32
    %55 = vmatprep.subr.mxu0 0.0
    %56 = vmatpush1.msra.mxu0 %v33
    %57 = vmatprep.subr.mxu0 0.0
    %58 = vmatpush1.msra.mxu0 %v34
    %59 = vmatprep.subr.mxu0 0.0
    %60 = vmatpush1.msra.mxu0 %v35
    %61 = vmatprep.subr.mxu0 0.0
    %62 = vmatpush1.msra.mxu0 %v36
    %63 = vmatprep.subr.mxu0 0.0
    %64 = vmatpush1.msra.mxu0 %v37
    %65 = vmatprep.subr.mxu0 0.0
    %66 = vmatpush1.msra.mxu0 %v38
    %67 = vmatprep.subr.mxu0 0.0
    %68 = vmatpush1.msra.mxu0 %v39
    %69 = vmatprep.subr.mxu0 0.0
    %70 = vmatpush1.msra.mxu0 %v40
    %71 = vmatprep.subr.mxu0 0.0
    %72 = vmatpush1.msra.mxu0 %v41
    %73 = vmatprep.subr.mxu0 0.0
    %74 = vmatpush1.msra.mxu0 %v42
    %75 = vmatprep.subr.mxu0 0.0
    %76 = vmatpush1.msra.mxu0 %v43
    %77 = vmatprep.subr.mxu0 0.0
    %78 = vmatpush1.msra.mxu0 %v44
    %79 = vmatprep.subr.mxu0 0.0
    %80 = vmatpush1.msra.mxu0 0.0
    %81 = vmatprep.subr.mxu0 0.0
    %82 = vmatpush1.msra.mxu0 0.0
    %83 = vmatprep.subr.mxu0 0.0
    %84 = vmatpush1.msra.mxu0 0.0
    %85 = vmatprep.subr.mxu0 0.0
    %86 = vmatpush1.msra.mxu0 0.0
    %87 = vmatprep.subr.mxu0 0.0
    %88 = vmatpush1.msra.mxu0 0.0
    %89 = vmatprep.subr.mxu0 0.0
    %90 = vmatpush1.msra.mxu0 0.0
    %91 = vmatprep.subr.mxu0 0.0
    %92 = vmatpush1.msra.mxu0 0.0
    %93 = vmatprep.subr.mxu0 0.0
    %94 = vmatpush1.msra.mxu0 0.0
    %95 = vmatprep.subr.mxu0 0.0
    %96 = vmatpush1.msra.mxu0 0.0
    %97 = vmatprep.subr.mxu0 0.0
    %98 = vmatpush1.msra.mxu0 0.0
    %99 = vmatprep.subr.mxu0 0.0
    %100 = vmatpush1.msra.mxu0 0.0
    %101 = vmatprep.subr.mxu0 0.0
    %102 = vmatpush1.msra.mxu0 0.0
    %103 = vmatprep.subr.mxu0 0.0
    %104 = vmatpush1.msra.mxu0 0.0
    %105 = vmatprep.subr.mxu0 0.0
    %106 = vmatpush1.msra.mxu0 0.0
    %107 = vmatprep.subr.mxu0 0.0
    %108 = vmatpush1.msra.mxu0 0.0
    %109 = vmatprep.subr.mxu0 0.0
    %110 = vmatpush1.msra.mxu0 0.0
    %111 = vmatprep.mubr.f32.mxu0 0.0
    %112 = vmatmul.mubr.f32.gmra.mrb[0].mxu0 %v46
    %v113 = vpop.f32.mrb[0].mxu0
    %v114 = vadd.f32 0.0, %v113
    %v115 = vpop.f32.mrb[0].mxu0
    %116 = vdwg.mxu0
    %v117 = vadd.f32 %v45, %v114
    %vm118 = vcmask 130048
    %119 = vst.msk [vmem:[#allocation2] sm:$0xff] %vm118, %v117
    // Predicated region
    $region26: #{tpu_custom_call.1} parent=1 // pred_check
      %p120 = pneg %p21
    $region27: #{tpu_custom_call.1} parent=1 // pred_check_branch
      %122 = sbr.rel (%p120) target = $region29
    $region28: #{tpu_custom_call.1} parent=1 // pred_region
      %s123 = smul.u32 0, 8
      %s124 = scalar_lea.vmem %s1, %s123
      %v125 = vld [vmem:[%s124] sm:$0xff]
      %v126 = vld [vmem:[#allocation2] sm:$0xff]
      %v127 = vld [vmem:[%s2] sm:$0xff]
      %v128 = vld [vmem:[%s2 + $0x8] sm:$0xff]
      %v129 = vld [vmem:[%s3] sm:$0xff]
      %v130 = vld [vmem:[%s3 + $0x8] sm:$0xff]
      %v132 = vsel %vm118, %v125, 0
      %134 = vmatprep.subr.mxu0 0.0
      %135 = vmatpush1.msra.mxu0 %v129
      %136 = vmatprep.subr.mxu0 0.0
      %137 = vmatpush1.msra.mxu0 %v130
      %138 = vmatprep.subr.mxu0 0.0
      %139 = vmatpush1.msra.mxu0 0.0
      %140 = vmatprep.subr.mxu0 0.0
      %141 = vmatpush1.msra.mxu0 0.0
      %142 = vmatprep.subr.mxu0 0.0
      %143 = vmatpush1.msra.mxu0 0.0
      %144 = vmatprep.subr.mxu0 0.0
      %145 = vmatpush1.msra.mxu0 0.0
      %146 = vmatprep.subr.mxu0 0.0
      %147 = vmatpush1.msra.mxu0 0.0
      %148 = vmatprep.subr.mxu0 0.0
      %149 = vmatpush1.msra.mxu0 0.0
      %150 = vmatprep.subr.mxu0 0.0
      %151 = vmatpush1.msra.mxu0 0.0
      %152 = vmatprep.subr.mxu0 0.0
      %153 = vmatpush1.msra.mxu0 0.0
      %154 = vmatprep.subr.mxu0 0.0
      %155 = vmatpush1.msra.mxu0 0.0
      %156 = vmatprep.subr.mxu0 0.0
      %157 = vmatpush1.msra.mxu0 0.0
      %158 = vmatprep.subr.mxu0 0.0
      %159 = vmatpush1.msra.mxu0 0.0
      %160 = vmatprep.subr.mxu0 0.0
      %161 = vmatpush1.msra.mxu0 0.0
      %162 = vmatprep.subr.mxu0 0.0
      %163 = vmatpush1.msra.mxu0 0.0
      %164 = vmatprep.subr.mxu0 0.0
      %165 = vmatpush1.msra.mxu0 0.0
      %166 = vmatprep.subr.mxu0 0.0
      %167 = vmatpush1.msra.mxu0 0.0
      %168 = vmatprep.subr.mxu0 0.0
      %169 = vmatpush1.msra.mxu0 0.0
      %170 = vmatprep.subr.mxu0 0.0
      %171 = vmatpush1.msra.mxu0 0.0
      %172 = vmatprep.subr.mxu0 0.0
      %173 = vmatpush1.msra.mxu0 0.0
      %174 = vmatprep.subr.mxu0 0.0
      %175 = vmatpush1.msra.mxu0 0.0
      %176 = vmatprep.subr.mxu0 0.0
      %177 = vmatpush1.msra.mxu0 0.0
      %178 = vmatprep.subr.mxu0 0.0
      %179 = vmatpush1.msra.mxu0 0.0
      %180 = vmatprep.subr.mxu0 0.0
      %181 = vmatpush1.msra.mxu0 0.0
      %182 = vmatprep.subr.mxu0 0.0
      %183 = vmatpush1.msra.mxu0 0.0
      %184 = vmatprep.subr.mxu0 0.0
      %185 = vmatpush1.msra.mxu0 0.0
      %186 = vmatprep.subr.mxu0 0.0
      %187 = vmatpush1.msra.mxu0 0.0
      %188 = vmatprep.subr.mxu0 0.0
      %189 = vmatpush1.msra.mxu0 0.0
      %190 = vmatprep.subr.mxu0 0.0
      %191 = vmatpush1.msra.mxu0 0.0
      %192 = vmatprep.subr.mxu0 0.0
      %193 = vmatpush1.msra.mxu0 0.0
      %194 = vmatprep.subr.mxu0 0.0
      %195 = vmatpush1.msra.mxu0 0.0
      %196 = vmatprep.subr.mxu0 0.0
      %197 = vmatpush1.msra.mxu0 0.0
      %198 = vmatprep.mubr.f32.mxu0 0.0
      %199 = vmatmul.mubr.f32.gmra.mrb[0].mxu0 %v132
      %v200 = vpop.f32.mrb[0].mxu0
      %v201 = vadd.f32 0.0, %v200
      %v202 = vpop.f32.mrb[0].mxu0
      %203 = vdwg.mxu0
      %v205 = vsel %vm118, %v126, 0
      %207 = vmatprep.subr.mxu0 0.0
      %208 = vmatpush1.msra.mxu0 %v127
      %209 = vmatprep.subr.mxu0 0.0
      %210 = vmatpush1.msra.mxu0 %v128
      %211 = vmatprep.subr.mxu0 0.0
      %212 = vmatpush1.msra.mxu0 0.0
      %213 = vmatprep.subr.mxu0 0.0
      %214 = vmatpush1.msra.mxu0 0.0
      %215 = vmatprep.subr.mxu0 0.0
      %216 = vmatpush1.msra.mxu0 0.0
      %217 = vmatprep.subr.mxu0 0.0
      %218 = vmatpush1.msra.mxu0 0.0
      %219 = vmatprep.subr.mxu0 0.0
      %220 = vmatpush1.msra.mxu0 0.0
      %221 = vmatprep.subr.mxu0 0.0
      %222 = vmatpush1.msra.mxu0 0.0
      %223 = vmatprep.subr.mxu0 0.0
      %224 = vmatpush1.msra.mxu0 0.0
      %225 = vmatprep.subr.mxu0 0.0
      %226 = vmatpush1.msra.mxu0 0.0
      %227 = vmatprep.subr.mxu0 0.0
      %228 = vmatpush1.msra.mxu0 0.0
      %229 = vmatprep.subr.mxu0 0.0
      %230 = vmatpush1.msra.mxu0 0.0
      %231 = vmatprep.subr.mxu0 0.0
      %232 = vmatpush1.msra.mxu0 0.0
      %233 = vmatprep.subr.mxu0 0.0
      %234 = vmatpush1.msra.mxu0 0.0
      %235 = vmatprep.subr.mxu0 0.0
      %236 = vmatpush1.msra.mxu0 0.0
      %237 = vmatprep.subr.mxu0 0.0
      %238 = vmatpush1.msra.mxu0 0.0
      %239 = vmatprep.subr.mxu0 0.0
      %240 = vmatpush1.msra.mxu0 0.0
      %241 = vmatprep.subr.mxu0 0.0
      %242 = vmatpush1.msra.mxu0 0.0
      %243 = vmatprep.subr.mxu0 0.0
      %244 = vmatpush1.msra.mxu0 0.0
      %245 = vmatprep.subr.mxu0 0.0
      %246 = vmatpush1.msra.mxu0 0.0
      %247 = vmatprep.subr.mxu0 0.0
      %248 = vmatpush1.msra.mxu0 0.0
      %249 = vmatprep.subr.mxu0 0.0
      %250 = vmatpush1.msra.mxu0 0.0
      %251 = vmatprep.subr.mxu0 0.0
      %252 = vmatpush1.msra.mxu0 0.0
      %253 = vmatprep.subr.mxu0 0.0
      %254 = vmatpush1.msra.mxu0 0.0
      %255 = vmatprep.subr.mxu0 0.0
      %256 = vmatpush1.msra.mxu0 0.0
      %257 = vmatprep.subr.mxu0 0.0
      %258 = vmatpush1.msra.mxu0 0.0
      %259 = vmatprep.subr.mxu0 0.0
      %260 = vmatpush1.msra.mxu0 0.0
      %261 = vmatprep.subr.mxu0 0.0
      %262 = vmatpush1.msra.mxu0 0.0
      %263 = vmatprep.subr.mxu0 0.0
      %264 = vmatpush1.msra.mxu0 0.0
      %265 = vmatprep.subr.mxu0 0.0
      %266 = vmatpush1.msra.mxu0 0.0
      %267 = vmatprep.subr.mxu0 0.0
      %268 = vmatpush1.msra.mxu0 0.0
      %269 = vmatprep.subr.mxu0 0.0
      %270 = vmatpush1.msra.mxu0 0.0
      %271 = vmatprep.mubr.f32.mxu0 0.0
      %272 = vmatmul.mubr.f32.gmra.mrb[0].mxu0 %v205
      %v273 = vpop.f32.mrb[0].mxu0
      %v274 = vadd.f32 %v201, %v273
      %v275 = vpop.f32.mrb[0].mxu0
      %276 = vdwg.mxu0
      %v277 = vld [vmem:[%s4] sm:$0x1]
      %v279 = vlaneseq
      %v280 = vshrl.u32 %v279, 7
      %v281 = vsub.s32 0, %v280
      %v282 = vrot.slane %v277, %v281
      %v284 = vadd.f32 %v274, %v282
      %285 = vst [vmem:[#allocation3] sm:$0xff] %v284
    $region29: #{tpu_custom_call.1} parent=1 // pred_fallthru
      _
    // Predicated region
    $region30: #{tpu_custom_call.1} parent=1 // pred_check
      _
    $region31: #{tpu_custom_call.1} parent=1 // pred_check_branch
      %287 = sbr.rel (0) target = $region33
    $region32: #{tpu_custom_call.1} parent=1 // pred_region
      %s289 = ssub.s32 128, 128
      %290 = vsyncadd [#allocation4], %s289
      %s292 = sshll.u32 [#allocation3], 4
      %s293 = int_to_ptr.vmem [resolvable:$true] %s292
      %295 = dma.vmem_to_hbm [thread:$0]  %s293, 128, %s5, [#allocation4]
    $region33: #{tpu_custom_call.1} parent=1 // pred_fallthru
      _
    // Predicated region
    $region34: #{tpu_custom_call.1} parent=1 // pred_check
      _
    $region35: #{tpu_custom_call.1} parent=1 // pred_check_branch
      %297 = sbr.rel (0) target = $region37
    $region36: #{tpu_custom_call.1} parent=1 // pred_region
      %298 = dma.done [#allocation4], 128
    $region37: #{tpu_custom_call.1} parent=1 // pred_fallthru
      _
    %299 = vsyncpa [#allocation4], 1

</llo_original>
